<compile_context>
chip_gen: v7x
topology: tpu7x:2x2x1
jax: 0.10.0
libtpu: 0.0.40
codegen_flags: <defaults>
</compile_context>

<pallas_src>
import functools

import jax
import jax.numpy as jnp
from jax import lax
from jax.experimental import pallas as pl
from jax.experimental.pallas import tpu as pltpu


def _genblock_kernel(w_ref, x_ref, gamma_ref, beta_ref, o_ref, *, eps, count):
    """Fused transposed-conv (per-sub-pixel batched matmul) + BatchNorm(train) + ReLU.

    w_ref:     (n_sub, cout, ksub)   per-sub-pixel weights (bf16/f32)
    x_ref:     (n_sub, ksub, M)      per-sub-pixel im2col columns, M = N*Hq*Wq
    gamma_ref: (cout, 1)             BN scale (f32)
    beta_ref:  (cout, 1)             BN shift (f32)
    o_ref:     (n_sub, cout, M)      lane-dense output (M multiple of 128)
    """
    # n_sub independent (cout, ksub) @ (ksub, M) matmuls, f32 accumulation on the MXU.
    r = jnp.einsum('sok,skm->som', w_ref[...], x_ref[...],
                   preferred_element_type=jnp.float32)          # (n_sub, cout, M) f32

    # One-pass batch statistics. Reduce the n_sub axis first (VALU sublane adds),
    # then the cross-lane (XLU) reduce runs on the smaller (cout, M) slabs.
    s1 = r.sum(axis=0)                                          # (cout, M)
    s2 = (r * r).sum(axis=0)                                    # (cout, M)
    inv_count = 1.0 / count
    mean = s1.sum(axis=1, keepdims=True) * inv_count            # (cout, 1)
    ex2 = s2.sum(axis=1, keepdims=True) * inv_count             # (cout, 1)
    var = jnp.maximum(ex2 - mean * mean, 0.0)                   # clamp vs. cancellation

    # Folded BN + ReLU: 3 VALU ops per element (mul, add, max); no centered slab.
    scale = lax.rsqrt(var + eps) * gamma_ref[...]               # (cout, 1)
    shift = beta_ref[...] - mean * scale                        # (cout, 1)
    o_ref[...] = jnp.maximum(r * scale + shift, 0.0).astype(o_ref.dtype)


def gen_block_forward(x_nchw, w_t, gamma, beta, *, stride, pad, eps=1e-5,
                      matmul_dtype=jnp.bfloat16, out_dtype=jnp.float32):
    """GenBlock forward. x_nchw: (N,Cin,H,W); w_t: (Cin,Cout,kH,kW) (PyTorch
    ConvTranspose2d layout, bias=False). Returns (N,Cout,H_out,W_out) in out_dtype."""
    n, cin, h, w = x_nchw.shape
    cin_w, cout, kh, kw = w_t.shape
    assert cin_w == cin
    s = stride
    h_out = (h - 1) * s - 2 * pad + kh
    w_out = (w - 1) * s - 2 * pad + kw
    if (kh % s) or (kw % s) or (h_out % s) or (w_out % s):
        # TODO(synk): non-uniform sub-pixel configs (kernel % stride != 0) would need
        # the zero-insertion fallback path; not implemented.
        raise NotImplementedError(
            "gen_block_forward requires kernel % stride == 0 and output dims "
            "divisible by stride (DCGAN-style GenBlock).")

    kk_h, kk_w = kh // s, kw // s           # taps per axis per sub-pixel position
    hq, wq = h_out // s, w_out // s
    ksub = kk_h * kk_w * cin
    n_sub = s * s
    m_cols = n * hq * wq

    # Static per-parity tap offsets: output row oy = s*qy + ry pulls kernel rows
    # ky = r0_y[ry] + s*ty from input rows iy = qy + base_y[ry] - ty.
    base_y = [(ry + pad) // s for ry in range(s)]
    r0_y = [(ry + pad) % s for ry in range(s)]
    base_x = [(rx + pad) // s for rx in range(s)]
    r0_x = [(rx + pad) % s for rx in range(s)]
    pad_t = max(0, (kk_h - 1) - min(base_y))
    pad_b = max(0, (hq - 1) + max(base_y) - (h - 1))
    pad_l = max(0, (kk_w - 1) - min(base_x))
    pad_r = max(0, (wq - 1) + max(base_x) - (w - 1))

    # One up-front channel-major transpose of the tiny input, then static window
    # slices; all later reshapes merge ADJACENT dims only (free bitcast reshapes).
    x_cm = jnp.transpose(x_nchw.astype(jnp.float32), (1, 0, 2, 3))     # (Cin,N,H,W)
    x_cm = jnp.pad(x_cm, ((0, 0), (0, 0), (pad_t, pad_b), (pad_l, pad_r)))

    # ---- wrapper-side im2col (per-sub-pixel columns) ---------------------------
    # TODO(synk): at production sizes move this into the kernel (pl.ANY + DMA of the
    # padded input, static tap slices in VMEM) to avoid the kk_h*kk_w-inflated copy
    # of X through HBM; at this toy size it is negligible layout plumbing.
    slabs = []
    for ry in range(s):
        for rx in range(s):
            for ty in range(kk_h):
                for tx in range(kk_w):
                    oy0 = base_y[ry] - ty + pad_t
                    ox0 = base_x[rx] - tx + pad_l
                    slabs.append(x_cm[:, :, oy0:oy0 + hq, ox0:ox0 + wq])  # (Cin,N,Hq,Wq)
    # (n_sub*kk, Cin, N, Hq, Wq) -> (n_sub, ksub, M): adjacent-dim merges only.
    x_cols = jnp.stack(slabs, axis=0).reshape(n_sub, ksub, m_cols).astype(matmul_dtype)

    # ---- per-sub-pixel weight matrices (no block-diagonal zeros) ----------------
    w_f32 = w_t.astype(jnp.float32)
    w_subs = []
    for ry in range(s):
        for rx in range(s):
            wsub = w_f32[:, :, r0_y[ry]::s, r0_x[rx]::s]                 # (Cin,Cout,kk_h,kk_w)
            wsub = jnp.transpose(wsub, (2, 3, 0, 1)).reshape(ksub, cout)  # rows (ty,tx,ci)
            w_subs.append(wsub.T)                                         # (Cout, ksub)
    w_mat = jnp.stack(w_subs, axis=0).astype(matmul_dtype)                # (n_sub,Cout,ksub)

    itm = jnp.dtype(matmul_dtype).itemsize
    ito = jnp.dtype(out_dtype).itemsize
    cost = pl.CostEstimate(
        flops=2 * n_sub * cout * ksub * m_cols + 8 * n_sub * cout * m_cols,
        transcendentals=cout,
        bytes_accessed=(n_sub * ksub * m_cols * itm + n_sub * cout * ksub * itm
                        + 2 * cout * 4 + n_sub * cout * m_cols * ito))

    # ---- single fused Pallas call (no grid; whole problem resident in VMEM) ----
    # TODO(synk): BatchNorm running_mean/running_var updates (training side effect)
    # are not materialized; forward output is unaffected.
    out_sub = pl.pallas_call(
        functools.partial(_genblock_kernel, eps=eps, count=float(n * h_out * w_out)),
        out_shape=jax.ShapeDtypeStruct((n_sub, cout, m_cols), out_dtype),
        in_specs=[pl.BlockSpec(memory_space=pltpu.MemorySpace.VMEM)
                  for _ in range(4)],
        out_specs=pl.BlockSpec(memory_space=pltpu.MemorySpace.VMEM),
        compiler_params=pltpu.CompilerParams(vmem_limit_bytes=32 * 1024 * 1024),
        cost_estimate=cost,
    )(w_mat, x_cols,
      gamma.astype(jnp.float32).reshape(cout, 1),
      beta.astype(jnp.float32).reshape(cout, 1))

    # ---- un-interleave sub-pixel positions back to NCHW -------------------------
    # TODO(synk): at production sizes keep the sub-pixel-major layout for the next
    # layer (or interleave in-kernel with strided/bitcast-packed stores) instead of
    # paying a full extra HBM round-trip for this relayout.
    out = out_sub.reshape(s, s, cout, n, hq, wq)
    out = jnp.transpose(out, (3, 2, 4, 0, 5, 1)).reshape(n, cout, h_out, w_out)
    return out


def gen_block_reference(x, w_t, gamma, beta, *, stride, pad, eps=1e-5):
    """Pure-JAX reference (XLA conv) for correctness checking."""
    kh = w_t.shape[2]
    p = kh - 1 - pad
    w_conv = jnp.transpose(jnp.flip(w_t, axis=(2, 3)), (1, 0, 2, 3))  # OIHW
    y = lax.conv_general_dilated(
        x, w_conv, window_strides=(1, 1), padding=[(p, p), (p, p)],
        lhs_dilation=(stride, stride),
        dimension_numbers=("NCHW", "OIHW", "NCHW"),
        precision=lax.Precision.HIGHEST)
    mean = jnp.mean(y, axis=(0, 2, 3), keepdims=True)
    var = jnp.mean(jnp.square(y - mean), axis=(0, 2, 3), keepdims=True)
    yn = (y - mean) * lax.rsqrt(var + eps) * gamma.reshape(1, -1, 1, 1) \
         + beta.reshape(1, -1, 1, 1)
    return jnp.maximum(yn, 0.0)


if __name__ == "__main__":
    # DCGAN-generator-style block: ni=4 -> no=8, kernel=4, stride=2, pad=1.
    N, NI, NO, H, W = 2, 4, 8, 16, 16
    KERNEL, STRIDE, PAD = 4, 2, 1

    key = jax.random.PRNGKey(0)
    k_x, k_w = jax.random.split(key)
    x = jax.random.normal(k_x, (N, NI, H, W), jnp.float32)
    # ConvTranspose2d weight layout: (in_channels, out_channels, kH, kW), bias=False
    w_t = 0.05 * jax.random.normal(k_w, (NI, NO, KERNEL, KERNEL), jnp.float32)
    gamma = jnp.ones((NO,), jnp.float32)   # BatchNorm2d default weight
    beta = jnp.zeros((NO,), jnp.float32)   # BatchNorm2d default bias

    h_out = (H - 1) * STRIDE - 2 * PAD + KERNEL
    ref = gen_block_reference(x, w_t, gamma, beta, stride=STRIDE, pad=PAD)

    # Default (production) path: bf16 MXU operands, f32 accumulate + f32 epilogue.
    fwd = jax.jit(functools.partial(gen_block_forward, stride=STRIDE, pad=PAD))
    out = jax.block_until_ready(fwd(x, w_t, gamma, beta))
    assert out.shape == (N, NO, h_out, h_out), out.shape
    err_bf16 = float(jnp.max(jnp.abs(out - ref)))
    assert jnp.allclose(out, ref, atol=7.5e-2, rtol=5e-2), err_bf16

    # Exact-numerics path (f32 matmul operands) for a tight correctness check.
    fwd_f32 = jax.jit(functools.partial(gen_block_forward, stride=STRIDE, pad=PAD,
                                        matmul_dtype=jnp.float32))
    out_f32 = jax.block_until_ready(fwd_f32(x, w_t, gamma, beta))
    err_f32 = float(jnp.max(jnp.abs(out_f32 - ref)))
    assert jnp.allclose(out_f32, ref, atol=1e-3, rtol=1e-3), err_f32

    print("KERNEL_OK")
</pallas_src>

<mosaic_0001>
module attributes {stable_mosaic.version = 11 : i64} {
  func.func @_genblock_kernel(%arg0: memref<4x8x16xbf16, #tpu.memory_space<vmem>>, %arg1: memref<4x16x512xbf16, #tpu.memory_space<vmem>>, %arg2: memref<8x1xf32, #tpu.memory_space<vmem>>, %arg3: memref<8x1xf32, #tpu.memory_space<vmem>>, %arg4: memref<4x8x512xf32, #tpu.memory_space<vmem>>) attributes {dimension_semantics = [], scalar_prefetch = 0 : i64, scratch_operands = 0 : i64, tpu.core_type = #tpu.core_type<tc>} {
    %c0 = arith.constant 0 : index
    %c0_0 = arith.constant 0 : index
    %c0_1 = arith.constant 0 : index
    %0 = vector.load %arg0[%c0, %c0_0, %c0_1] : memref<4x8x16xbf16, #tpu.memory_space<vmem>>, vector<4x8x16xbf16>
    %c0_2 = arith.constant 0 : index
    %c0_3 = arith.constant 0 : index
    %c0_4 = arith.constant 0 : index
    %1 = vector.load %arg1[%c0_2, %c0_3, %c0_4] : memref<4x16x512xbf16, #tpu.memory_space<vmem>>, vector<4x16x512xbf16>
    "tpu.trace_start"() <{level = 10 : i32, message = "sok,skm->som"}> : () -> ()
    %cst = arith.constant dense<0.000000e+00> : vector<4x8x512xf32>
    %2 = tpu.matmul %0, %1, %cst {dimension_numbers = #tpu.dot_dimension_numbers<[2], [1], [1], [2], [0, 0, 0, 1, 1, 2], [0], [0]>} : vector<4x8x16xbf16>, vector<4x16x512xbf16>, vector<4x8x512xf32> -> vector<4x8x512xf32>
    "tpu.trace_stop"() : () -> ()
    %cst_5 = arith.constant dense<0.000000e+00> : vector<8x512xf32>
    %3 = vector.multi_reduction <add>, %2, %cst_5 [0] : vector<4x8x512xf32> to vector<8x512xf32>
    %4 = arith.mulf %2, %2 : vector<4x8x512xf32>
    %cst_6 = arith.constant dense<0.000000e+00> : vector<8x512xf32>
    %5 = vector.multi_reduction <add>, %4, %cst_6 [0] : vector<4x8x512xf32> to vector<8x512xf32>
    %cst_7 = arith.constant dense<0.000000e+00> : vector<8xf32>
    %6 = vector.multi_reduction <add>, %3, %cst_7 [1] : vector<8x512xf32> to vector<8xf32>
    %7 = vector.shape_cast %6 : vector<8xf32> to vector<8x1xf32>
    %cst_8 = arith.constant 4.8828125E-4 : f32
    %8 = vector.broadcast %cst_8 : f32 to vector<8x1xf32>
    %9 = arith.mulf %7, %8 : vector<8x1xf32>
    %cst_9 = arith.constant dense<0.000000e+00> : vector<8xf32>
    %10 = vector.multi_reduction <add>, %5, %cst_9 [1] : vector<8x512xf32> to vector<8xf32>
    %11 = vector.shape_cast %10 : vector<8xf32> to vector<8x1xf32>
    %cst_10 = arith.constant 4.8828125E-4 : f32
    %12 = vector.broadcast %cst_10 : f32 to vector<8x1xf32>
    %13 = arith.mulf %11, %12 : vector<8x1xf32>
    %14 = arith.mulf %9, %9 : vector<8x1xf32>
    %15 = arith.subf %13, %14 : vector<8x1xf32>
    %cst_11 = arith.constant 0.000000e+00 : f32
    %16 = vector.broadcast %cst_11 : f32 to vector<8x1xf32>
    %17 = arith.maximumf %15, %16 : vector<8x1xf32>
    %cst_12 = arith.constant 9.99999974E-6 : f32
    %18 = vector.broadcast %cst_12 : f32 to vector<8x1xf32>
    %19 = arith.addf %17, %18 : vector<8x1xf32>
    %20 = math.rsqrt %19 : vector<8x1xf32>
    %c0_13 = arith.constant 0 : index
    %c0_14 = arith.constant 0 : index
    %21 = vector.load %arg2[%c0_13, %c0_14] : memref<8x1xf32, #tpu.memory_space<vmem>>, vector<8x1xf32>
    %22 = arith.mulf %20, %21 : vector<8x1xf32>
    %c0_15 = arith.constant 0 : index
    %c0_16 = arith.constant 0 : index
    %23 = vector.load %arg3[%c0_15, %c0_16] : memref<8x1xf32, #tpu.memory_space<vmem>>, vector<8x1xf32>
    %24 = arith.mulf %9, %22 : vector<8x1xf32>
    %25 = arith.subf %23, %24 : vector<8x1xf32>
    %26 = vector.shape_cast %22 : vector<8x1xf32> to vector<1x8x1xf32>
    %27 = vector.broadcast %26 : vector<1x8x1xf32> to vector<4x8x512xf32>
    %28 = arith.mulf %2, %27 : vector<4x8x512xf32>
    %29 = vector.shape_cast %25 : vector<8x1xf32> to vector<1x8x1xf32>
    %30 = vector.broadcast %29 : vector<1x8x1xf32> to vector<4x8x512xf32>
    %31 = arith.addf %28, %30 : vector<4x8x512xf32>
    %cst_17 = arith.constant 0.000000e+00 : f32
    %32 = vector.broadcast %cst_17 : f32 to vector<4x8x512xf32>
    %33 = arith.maximumf %31, %32 : vector<4x8x512xf32>
    %c0_18 = arith.constant 0 : index
    %c0_19 = arith.constant 0 : index
    %c0_20 = arith.constant 0 : index
    %34 = vector.load %arg4[%c0_18, %c0_19, %c0_20] : memref<4x8x512xf32, #tpu.memory_space<vmem>>, vector<4x8x512xf32>
    tpu.vector_store %arg4[%c0_18, %c0_19, %c0_20], %33 {strides = array<i32>} : memref<4x8x512xf32, #tpu.memory_space<vmem>>, vector<4x8x512xf32>,
    return
  }
}

</mosaic_0001>

<llo_original>
// kernel: gen_block_forward.1
$region0: #{gen_block_forward.1}
  #allocation0 [shape = 'u32[]', space=smem, size = 0x4, offset = 0x4, fixed_abs, tag = 'smem constant byte address 0x4 - core index']
  #allocation1 [shape = 'u32[144,128]{1,0:T(1,128)}', space=vmem, size = 0x12000, scoped, tag = 'internal scratch']
  %s0 = inlined_call_operand.vmem [shape: bf16[4,8,16], index: 0, kind: input, shape index: {}]
  %s1 = inlined_call_operand.vmem [shape: bf16[4,16,512], index: 1, kind: input, shape index: {}]
  %s2 = inlined_call_operand.vmem [shape: f32[8,1], index: 2, kind: input, shape index: {}]
  %s3 = inlined_call_operand.vmem [shape: f32[8,1], index: 3, kind: input, shape index: {}]
  %s4 = inlined_call_operand.vmem [shape: f32[4,8,512], index: 4, kind: output, shape index: {}]
  %s5 = sld [smem:[#allocation0]]
  $region26: #{gen_block_forward.1} parent=0
    _
  %s7 = ssub.s32 1, %s5
  %s8 = scalar_select 0, %s7, %s5
  // Predicated region
  $region2: #{gen_block_forward.1} parent=0 // pred_check
    _
  $region3: #{gen_block_forward.1} parent=0 // pred_check_branch
    %10 = sbr.rel (0) target = $region5
  $region4: #{gen_block_forward.1} parent=0 // pred_region
    _
  $region5: #{gen_block_forward.1} parent=0 // pred_fallthru
    _
  // Predicated region
  $region6: #{gen_block_forward.1} parent=0 // pred_check
    _
  $region7: #{gen_block_forward.1} parent=0 // pred_check_branch
    %12 = sbr.rel (0) target = $region9
  $region8: #{gen_block_forward.1} parent=0 // pred_region
    _
  $region9: #{gen_block_forward.1} parent=0 // pred_fallthru
    _
  // Predicated region
  $region10: #{gen_block_forward.1} parent=0 // pred_check
    _
  $region11: #{gen_block_forward.1} parent=0 // pred_check_branch
    %14 = sbr.rel (0) target = $region13
  $region12: #{gen_block_forward.1} parent=0 // pred_region
    _
  $region13: #{gen_block_forward.1} parent=0 // pred_fallthru
    _
  // Predicated region
  $region14: #{gen_block_forward.1} parent=0 // pred_check
    _
  $region15: #{gen_block_forward.1} parent=0 // pred_check_branch
    %16 = sbr.rel (0) target = $region17
  $region16: #{gen_block_forward.1} parent=0 // pred_region
    _
  $region17: #{gen_block_forward.1} parent=0 // pred_fallthru
    _
  %v18 = vld [vmem:[%s0] sm:$0xf]
  %v19 = vld [vmem:[%s0 + $0x4] sm:$0xf]
  %v20 = vld [vmem:[%s0 + $0x8] sm:$0xf]
  %v21 = vld [vmem:[%s0 + $0xc] sm:$0xf]
  %v22 = vld [vmem:[%s1] sm:$0xff]
  %v23 = vld [vmem:[%s1 + $0x8] sm:$0xff]
  %v24 = vld [vmem:[%s1 + $0x10] sm:$0xff]
  %v25 = vld [vmem:[%s1 + $0x18] sm:$0xff]
  %v26 = vld [vmem:[%s1 + $0x20] sm:$0xff]
  %v27 = vld [vmem:[%s1 + $0x28] sm:$0xff]
  %v28 = vld [vmem:[%s1 + $0x30] sm:$0xff]
  %v29 = vld [vmem:[%s1 + $0x38] sm:$0xff]
  %v30 = vld [vmem:[%s1 + $0x40] sm:$0xff]
  %v31 = vld [vmem:[%s1 + $0x48] sm:$0xff]
  %v32 = vld [vmem:[%s1 + $0x50] sm:$0xff]
  %v33 = vld [vmem:[%s1 + $0x58] sm:$0xff]
  %v34 = vld [vmem:[%s1 + $0x60] sm:$0xff]
  %v35 = vld [vmem:[%s1 + $0x68] sm:$0xff]
  %v36 = vld [vmem:[%s1 + $0x70] sm:$0xff]
  %v37 = vld [vmem:[%s1 + $0x78] sm:$0xff]
  %v42 = vunpack.c.l.b16 %v22
  %v43 = vunpack.c.h.b16 %v22
  %v44 = vunpack.c.l.b16 %v23
  %v45 = vunpack.c.h.b16 %v23
  %v46 = vunpack.c.l.b16 %v24
  %v47 = vunpack.c.h.b16 %v24
  %v48 = vunpack.c.l.b16 %v25
  %v49 = vunpack.c.h.b16 %v25
  %v50 = vpack.c.b16 %v46, %v42
  %v51 = vpack.c.b16 %v47, %v43
  %v52 = vpack.c.b16 %v48, %v44
  %v53 = vpack.c.b16 %v49, %v45
  %vm58 = vcmask 130048
  %v60 = vsel %vm58, %v18, 0
  %62 = vmatprep.subr.bf16.mxu0 %v51
  %63 = vmatpush1.bf16.msra.mxu0 %v50
  %64 = vmatprep.subr.bf16.mxu0 0
  %65 = vmatpush1.bf16.msra.mxu0 0
  %66 = vmatprep.subr.bf16.mxu0 0
  %67 = vmatpush1.bf16.msra.mxu0 0
  %68 = vmatprep.subr.bf16.mxu0 0
  %69 = vmatpush1.bf16.msra.mxu0 0
  %70 = vmatprep.subr.bf16.mxu0 0
  %71 = vmatpush1.bf16.msra.mxu0 0
  %72 = vmatprep.subr.bf16.mxu0 0
  %73 = vmatpush1.bf16.msra.mxu0 0
  %74 = vmatprep.subr.bf16.mxu0 0
  %75 = vmatpush1.bf16.msra.mxu0 0
  %76 = vmatprep.subr.bf16.mxu0 0
  %77 = vmatpush1.bf16.msra.mxu0 0
  %78 = vmatprep.subr.bf16.mxu0 0
  %79 = vmatpush1.bf16.msra.mxu0 0
  %80 = vmatprep.subr.bf16.mxu0 0
  %81 = vmatpush1.bf16.msra.mxu0 0
  %82 = vmatprep.subr.bf16.mxu0 0
  %83 = vmatpush1.bf16.msra.mxu0 0
  %84 = vmatprep.subr.bf16.mxu0 0
  %85 = vmatpush1.bf16.msra.mxu0 0
  %86 = vmatprep.subr.bf16.mxu0 0
  %87 = vmatpush1.bf16.msra.mxu0 0
  %88 = vmatprep.subr.bf16.mxu0 0
  %89 = vmatpush1.bf16.msra.mxu0 0
  %90 = vmatprep.subr.bf16.mxu0 0
  %91 = vmatpush1.bf16.msra.mxu0 0
  %92 = vmatprep.subr.bf16.mxu0 0
  %93 = vmatpush1.bf16.msra.mxu0 0
  %94 = vmatprep.mubr.bf16.mxu0 0
  %95 = vmatmul.mubr.bf16.gmra.mrb[0].mxu0 %v60
  %v96 = vpop.f32.mrb[0].mxu0
  %v97 = vadd.f32 0.0, %v96
  %v98 = vpop.f32.mrb[0].mxu0
  %v99 = vadd.f32 0.0, %v98
  %v100 = vpop.f32.mrb[0].mxu0
  %v101 = vpop.f32.mrb[0].mxu0
  %102 = vdwg.mxu0
  %103 = vmatprep.subr.bf16.mxu0 %v53
  %104 = vmatpush1.bf16.msra.mxu0 %v52
  %105 = vmatprep.subr.bf16.mxu0 0
  %106 = vmatpush1.bf16.msra.mxu0 0
  %107 = vmatprep.subr.bf16.mxu0 0
  %108 = vmatpush1.bf16.msra.mxu0 0
  %109 = vmatprep.subr.bf16.mxu0 0
  %110 = vmatpush1.bf16.msra.mxu0 0
  %111 = vmatprep.subr.bf16.mxu0 0
  %112 = vmatpush1.bf16.msra.mxu0 0
  %113 = vmatprep.subr.bf16.mxu0 0
  %114 = vmatpush1.bf16.msra.mxu0 0
  %115 = vmatprep.subr.bf16.mxu0 0
  %116 = vmatpush1.bf16.msra.mxu0 0
  %117 = vmatprep.subr.bf16.mxu0 0
  %118 = vmatpush1.bf16.msra.mxu0 0
  %119 = vmatprep.subr.bf16.mxu0 0
  %120 = vmatpush1.bf16.msra.mxu0 0
  %121 = vmatprep.subr.bf16.mxu0 0
  %122 = vmatpush1.bf16.msra.mxu0 0
  %123 = vmatprep.subr.bf16.mxu0 0
  %124 = vmatpush1.bf16.msra.mxu0 0
  %125 = vmatprep.subr.bf16.mxu0 0
  %126 = vmatpush1.bf16.msra.mxu0 0
  %127 = vmatprep.subr.bf16.mxu0 0
  %128 = vmatpush1.bf16.msra.mxu0 0
  %129 = vmatprep.subr.bf16.mxu0 0
  %130 = vmatpush1.bf16.msra.mxu0 0
  %131 = vmatprep.subr.bf16.mxu0 0
  %132 = vmatpush1.bf16.msra.mxu0 0
  %133 = vmatprep.subr.bf16.mxu0 0
  %134 = vmatpush1.bf16.msra.mxu0 0
  %135 = vmatprep.mubr.bf16.mxu0 0
  %136 = vmatmul.mubr.bf16.gmra.mrb[0].mxu0 %v60
  %v137 = vpop.f32.mrb[0].mxu0
  %v138 = vadd.f32 0.0, %v137
  %v139 = vpop.f32.mrb[0].mxu0
  %v140 = vadd.f32 0.0, %v139
  %v141 = vpop.f32.mrb[0].mxu0
  %v142 = vpop.f32.mrb[0].mxu0
  %143 = vdwg.mxu0
  %v148 = vunpack.c.l.b16 %v26
  %v149 = vunpack.c.h.b16 %v26
  %v150 = vunpack.c.l.b16 %v27
  %v151 = vunpack.c.h.b16 %v27
  %v152 = vunpack.c.l.b16 %v28
  %v153 = vunpack.c.h.b16 %v28
  %v154 = vunpack.c.l.b16 %v29
  %v155 = vunpack.c.h.b16 %v29
  %v156 = vpack.c.b16 %v152, %v148
  %v157 = vpack.c.b16 %v153, %v149
  %v158 = vpack.c.b16 %v154, %v150
  %v159 = vpack.c.b16 %v155, %v151
  %v165 = vsel %vm58, %v19, 0
  %167 = vmatprep.subr.bf16.mxu0 %v157
  %168 = vmatpush1.bf16.msra.mxu0 %v156
  %169 = vmatprep.subr.bf16.mxu0 0
  %170 = vmatpush1.bf16.msra.mxu0 0
  %171 = vmatprep.subr.bf16.mxu0 0
  %172 = vmatpush1.bf16.msra.mxu0 0
  %173 = vmatprep.subr.bf16.mxu0 0
  %174 = vmatpush1.bf16.msra.mxu0 0
  %175 = vmatprep.subr.bf16.mxu0 0
  %176 = vmatpush1.bf16.msra.mxu0 0
  %177 = vmatprep.subr.bf16.mxu0 0
  %178 = vmatpush1.bf16.msra.mxu0 0
  %179 = vmatprep.subr.bf16.mxu0 0
  %180 = vmatpush1.bf16.msra.mxu0 0
  %181 = vmatprep.subr.bf16.mxu0 0
  %182 = vmatpush1.bf16.msra.mxu0 0
  %183 = vmatprep.subr.bf16.mxu0 0
  %184 = vmatpush1.bf16.msra.mxu0 0
  %185 = vmatprep.subr.bf16.mxu0 0
  %186 = vmatpush1.bf16.msra.mxu0 0
  %187 = vmatprep.subr.bf16.mxu0 0
  %188 = vmatpush1.bf16.msra.mxu0 0
  %189 = vmatprep.subr.bf16.mxu0 0
  %190 = vmatpush1.bf16.msra.mxu0 0
  %191 = vmatprep.subr.bf16.mxu0 0
  %192 = vmatpush1.bf16.msra.mxu0 0
  %193 = vmatprep.subr.bf16.mxu0 0
  %194 = vmatpush1.bf16.msra.mxu0 0
  %195 = vmatprep.subr.bf16.mxu0 0
  %196 = vmatpush1.bf16.msra.mxu0 0
  %197 = vmatprep.subr.bf16.mxu0 0
  %198 = vmatpush1.bf16.msra.mxu0 0
  %199 = vmatprep.mubr.bf16.mxu0 0
  %200 = vmatmul.mubr.bf16.gmra.mrb[0].mxu0 %v165
  %v201 = vpop.f32.mrb[0].mxu0
  %v202 = vadd.f32 0.0, %v201
  %v203 = vpop.f32.mrb[0].mxu0
  %v204 = vadd.f32 0.0, %v203
  %v205 = vpop.f32.mrb[0].mxu0
  %v206 = vpop.f32.mrb[0].mxu0
  %207 = vdwg.mxu0
  %208 = vmatprep.subr.bf16.mxu0 %v159
  %209 = vmatpush1.bf16.msra.mxu0 %v158
  %210 = vmatprep.subr.bf16.mxu0 0
  %211 = vmatpush1.bf16.msra.mxu0 0
  %212 = vmatprep.subr.bf16.mxu0 0
  %213 = vmatpush1.bf16.msra.mxu0 0
  %214 = vmatprep.subr.bf16.mxu0 0
  %215 = vmatpush1.bf16.msra.mxu0 0
  %216 = vmatprep.subr.bf16.mxu0 0
  %217 = vmatpush1.bf16.msra.mxu0 0
  %218 = vmatprep.subr.bf16.mxu0 0
  %219 = vmatpush1.bf16.msra.mxu0 0
  %220 = vmatprep.subr.bf16.mxu0 0
  %221 = vmatpush1.bf16.msra.mxu0 0
  %222 = vmatprep.subr.bf16.mxu0 0
  %223 = vmatpush1.bf16.msra.mxu0 0
  %224 = vmatprep.subr.bf16.mxu0 0
  %225 = vmatpush1.bf16.msra.mxu0 0
  %226 = vmatprep.subr.bf16.mxu0 0
  %227 = vmatpush1.bf16.msra.mxu0 0
  %228 = vmatprep.subr.bf16.mxu0 0
  %229 = vmatpush1.bf16.msra.mxu0 0
  %230 = vmatprep.subr.bf16.mxu0 0
  %231 = vmatpush1.bf16.msra.mxu0 0
  %232 = vmatprep.subr.bf16.mxu0 0
  %233 = vmatpush1.bf16.msra.mxu0 0
  %234 = vmatprep.subr.bf16.mxu0 0
  %235 = vmatpush1.bf16.msra.mxu0 0
  %236 = vmatprep.subr.bf16.mxu0 0
  %237 = vmatpush1.bf16.msra.mxu0 0
  %238 = vmatprep.subr.bf16.mxu0 0
  %239 = vmatpush1.bf16.msra.mxu0 0
  %240 = vmatprep.mubr.bf16.mxu0 0
  %241 = vmatmul.mubr.bf16.gmra.mrb[0].mxu0 %v165
  %v242 = vpop.f32.mrb[0].mxu0
  %v243 = vadd.f32 0.0, %v242
  %v244 = vpop.f32.mrb[0].mxu0
  %v245 = vadd.f32 0.0, %v244
  %v246 = vpop.f32.mrb[0].mxu0
  %v247 = vpop.f32.mrb[0].mxu0
  %248 = vdwg.mxu0
  %v253 = vunpack.c.l.b16 %v30
  %v254 = vunpack.c.h.b16 %v30
  %v255 = vunpack.c.l.b16 %v31
  %v256 = vunpack.c.h.b16 %v31
  %v257 = vunpack.c.l.b16 %v32
  %v258 = vunpack.c.h.b16 %v32
  %v259 = vunpack.c.l.b16 %v33
  %v260 = vunpack.c.h.b16 %v33
  %v261 = vpack.c.b16 %v257, %v253
  %v262 = vpack.c.b16 %v258, %v254
  %v263 = vpack.c.b16 %v259, %v255
  %v264 = vpack.c.b16 %v260, %v256
  %v270 = vsel %vm58, %v20, 0
  %272 = vmatprep.subr.bf16.mxu0 %v262
  %273 = vmatpush1.bf16.msra.mxu0 %v261
  %274 = vmatprep.subr.bf16.mxu0 0
  %275 = vmatpush1.bf16.msra.mxu0 0
  %276 = vmatprep.subr.bf16.mxu0 0
  %277 = vmatpush1.bf16.msra.mxu0 0
  %278 = vmatprep.subr.bf16.mxu0 0
  %279 = vmatpush1.bf16.msra.mxu0 0
  %280 = vmatprep.subr.bf16.mxu0 0
  %281 = vmatpush1.bf16.msra.mxu0 0
  %282 = vmatprep.subr.bf16.mxu0 0
  %283 = vmatpush1.bf16.msra.mxu0 0
  %284 = vmatprep.subr.bf16.mxu0 0
  %285 = vmatpush1.bf16.msra.mxu0 0
  %286 = vmatprep.subr.bf16.mxu0 0
  %287 = vmatpush1.bf16.msra.mxu0 0
  %288 = vmatprep.subr.bf16.mxu0 0
  %289 = vmatpush1.bf16.msra.mxu0 0
  %290 = vmatprep.subr.bf16.mxu0 0
  %291 = vmatpush1.bf16.msra.mxu0 0
  %292 = vmatprep.subr.bf16.mxu0 0
  %293 = vmatpush1.bf16.msra.mxu0 0
  %294 = vmatprep.subr.bf16.mxu0 0
  %295 = vmatpush1.bf16.msra.mxu0 0
  %296 = vmatprep.subr.bf16.mxu0 0
  %297 = vmatpush1.bf16.msra.mxu0 0
  %298 = vmatprep.subr.bf16.mxu0 0
  %299 = vmatpush1.bf16.msra.mxu0 0
  %300 = vmatprep.subr.bf16.mxu0 0
  %301 = vmatpush1.bf16.msra.mxu0 0
  %302 = vmatprep.subr.bf16.mxu0 0
  %303 = vmatpush1.bf16.msra.mxu0 0
  %304 = vmatprep.mubr.bf16.mxu0 0
  %305 = vmatmul.mubr.bf16.gmra.mrb[0].mxu0 %v270
  %v306 = vpop.f32.mrb[0].mxu0
  %v307 = vadd.f32 0.0, %v306
  %v308 = vpop.f32.mrb[0].mxu0
  %v309 = vadd.f32 0.0, %v308
  %v310 = vpop.f32.mrb[0].mxu0
  %v311 = vpop.f32.mrb[0].mxu0
  %312 = vdwg.mxu0
  %313 = vmatprep.subr.bf16.mxu0 %v264
  %314 = vmatpush1.bf16.msra.mxu0 %v263
  %315 = vmatprep.subr.bf16.mxu0 0
  %316 = vmatpush1.bf16.msra.mxu0 0
  %317 = vmatprep.subr.bf16.mxu0 0
  %318 = vmatpush1.bf16.msra.mxu0 0
  %319 = vmatprep.subr.bf16.mxu0 0
  %320 = vmatpush1.bf16.msra.mxu0 0
  %321 = vmatprep.subr.bf16.mxu0 0
  %322 = vmatpush1.bf16.msra.mxu0 0
  %323 = vmatprep.subr.bf16.mxu0 0
  %324 = vmatpush1.bf16.msra.mxu0 0
  %325 = vmatprep.subr.bf16.mxu0 0
  %326 = vmatpush1.bf16.msra.mxu0 0
  %327 = vmatprep.subr.bf16.mxu0 0
  %328 = vmatpush1.bf16.msra.mxu0 0
  %329 = vmatprep.subr.bf16.mxu0 0
  %330 = vmatpush1.bf16.msra.mxu0 0
  %331 = vmatprep.subr.bf16.mxu0 0
  %332 = vmatpush1.bf16.msra.mxu0 0
  %333 = vmatprep.subr.bf16.mxu0 0
  %334 = vmatpush1.bf16.msra.mxu0 0
  %335 = vmatprep.subr.bf16.mxu0 0
  %336 = vmatpush1.bf16.msra.mxu0 0
  %337 = vmatprep.subr.bf16.mxu0 0
  %338 = vmatpush1.bf16.msra.mxu0 0
  %339 = vmatprep.subr.bf16.mxu0 0
  %340 = vmatpush1.bf16.msra.mxu0 0
  %341 = vmatprep.subr.bf16.mxu0 0
  %342 = vmatpush1.bf16.msra.mxu0 0
  %343 = vmatprep.subr.bf16.mxu0 0
  %344 = vmatpush1.bf16.msra.mxu0 0
  %345 = vmatprep.mubr.bf16.mxu0 0
  %346 = vmatmul.mubr.bf16.gmra.mrb[0].mxu0 %v270
  %v347 = vpop.f32.mrb[0].mxu0
  %v348 = vadd.f32 0.0, %v347
  %v349 = vpop.f32.mrb[0].mxu0
  %v350 = vadd.f32 0.0, %v349
  %v351 = vpop.f32.mrb[0].mxu0
  %v352 = vpop.f32.mrb[0].mxu0
  %353 = vdwg.mxu0
  %v358 = vunpack.c.l.b16 %v34
  %v359 = vunpack.c.h.b16 %v34
  %v360 = vunpack.c.l.b16 %v35
  %v361 = vunpack.c.h.b16 %v35
  %v362 = vunpack.c.l.b16 %v36
  %v363 = vunpack.c.h.b16 %v36
  %v364 = vunpack.c.l.b16 %v37
  %v365 = vunpack.c.h.b16 %v37
  %v366 = vpack.c.b16 %v362, %v358
  %v367 = vpack.c.b16 %v363, %v359
  %v368 = vpack.c.b16 %v364, %v360
  %v369 = vpack.c.b16 %v365, %v361
  %v375 = vsel %vm58, %v21, 0
  %377 = vmatprep.subr.bf16.mxu0 %v367
  %378 = vmatpush1.bf16.msra.mxu0 %v366
  %379 = vmatprep.subr.bf16.mxu0 0
  %380 = vmatpush1.bf16.msra.mxu0 0
  %381 = vmatprep.subr.bf16.mxu0 0
  %382 = vmatpush1.bf16.msra.mxu0 0
  %383 = vmatprep.subr.bf16.mxu0 0
  %384 = vmatpush1.bf16.msra.mxu0 0
  %385 = vmatprep.subr.bf16.mxu0 0
  %386 = vmatpush1.bf16.msra.mxu0 0
  %387 = vmatprep.subr.bf16.mxu0 0
  %388 = vmatpush1.bf16.msra.mxu0 0
  %389 = vmatprep.subr.bf16.mxu0 0
  %390 = vmatpush1.bf16.msra.mxu0 0
  %391 = vmatprep.subr.bf16.mxu0 0
  %392 = vmatpush1.bf16.msra.mxu0 0
  %393 = vmatprep.subr.bf16.mxu0 0
  %394 = vmatpush1.bf16.msra.mxu0 0
  %395 = vmatprep.subr.bf16.mxu0 0
  %396 = vmatpush1.bf16.msra.mxu0 0
  %397 = vmatprep.subr.bf16.mxu0 0
  %398 = vmatpush1.bf16.msra.mxu0 0
  %399 = vmatprep.subr.bf16.mxu0 0
  %400 = vmatpush1.bf16.msra.mxu0 0
  %401 = vmatprep.subr.bf16.mxu0 0
  %402 = vmatpush1.bf16.msra.mxu0 0
  %403 = vmatprep.subr.bf16.mxu0 0
  %404 = vmatpush1.bf16.msra.mxu0 0
  %405 = vmatprep.subr.bf16.mxu0 0
  %406 = vmatpush1.bf16.msra.mxu0 0
  %407 = vmatprep.subr.bf16.mxu0 0
  %408 = vmatpush1.bf16.msra.mxu0 0
  %409 = vmatprep.mubr.bf16.mxu0 0
  %410 = vmatmul.mubr.bf16.gmra.mrb[0].mxu0 %v375
  %v411 = vpop.f32.mrb[0].mxu0
  %v412 = vadd.f32 0.0, %v411
  %v413 = vpop.f32.mrb[0].mxu0
  %v414 = vadd.f32 0.0, %v413
  %v415 = vpop.f32.mrb[0].mxu0
  %v416 = vpop.f32.mrb[0].mxu0
  %417 = vdwg.mxu0
  %418 = vmatprep.subr.bf16.mxu0 %v369
  %419 = vmatpush1.bf16.msra.mxu0 %v368
  %420 = vmatprep.subr.bf16.mxu0 0
  %421 = vmatpush1.bf16.msra.mxu0 0
  %422 = vmatprep.subr.bf16.mxu0 0
  %423 = vmatpush1.bf16.msra.mxu0 0
  %424 = vmatprep.subr.bf16.mxu0 0
  %425 = vmatpush1.bf16.msra.mxu0 0
  %426 = vmatprep.subr.bf16.mxu0 0
  %427 = vmatpush1.bf16.msra.mxu0 0
  %428 = vmatprep.subr.bf16.mxu0 0
  %429 = vmatpush1.bf16.msra.mxu0 0
  %430 = vmatprep.subr.bf16.mxu0 0
  %431 = vmatpush1.bf16.msra.mxu0 0
  %432 = vmatprep.subr.bf16.mxu0 0
  %433 = vmatpush1.bf16.msra.mxu0 0
  %434 = vmatprep.subr.bf16.mxu0 0
  %435 = vmatpush1.bf16.msra.mxu0 0
  %436 = vmatprep.subr.bf16.mxu0 0
  %437 = vmatpush1.bf16.msra.mxu0 0
  %438 = vmatprep.subr.bf16.mxu0 0
  %439 = vmatpush1.bf16.msra.mxu0 0
  %440 = vmatprep.subr.bf16.mxu0 0
  %441 = vmatpush1.bf16.msra.mxu0 0
  %442 = vmatprep.subr.bf16.mxu0 0
  %443 = vmatpush1.bf16.msra.mxu0 0
  %444 = vmatprep.subr.bf16.mxu0 0
  %445 = vmatpush1.bf16.msra.mxu0 0
  %446 = vmatprep.subr.bf16.mxu0 0
  %447 = vmatpush1.bf16.msra.mxu0 0
  %448 = vmatprep.subr.bf16.mxu0 0
  %449 = vmatpush1.bf16.msra.mxu0 0
  %450 = vmatprep.mubr.bf16.mxu0 0
  %451 = vmatmul.mubr.bf16.gmra.mrb[0].mxu0 %v375
  %v452 = vpop.f32.mrb[0].mxu0
  %v453 = vadd.f32 0.0, %v452
  %v454 = vpop.f32.mrb[0].mxu0
  %v455 = vadd.f32 0.0, %v454
  %v456 = vpop.f32.mrb[0].mxu0
  %v457 = vpop.f32.mrb[0].mxu0
  %458 = vdwg.mxu0
  %v459 = vadd.f32 %v97, %v202
  %v460 = vadd.f32 %v459, %v307
  %v461 = vadd.f32 %v460, %v412
  %v462 = vadd.f32 %v99, %v204
  %v463 = vadd.f32 %v462, %v309
  %v464 = vadd.f32 %v463, %v414
  %v465 = vadd.f32 %v138, %v243
  %v466 = vadd.f32 %v465, %v348
  %v467 = vadd.f32 %v466, %v453
  %v468 = vadd.f32 %v140, %v245
  %v469 = vadd.f32 %v468, %v350
  %v470 = vadd.f32 %v469, %v455
  %v471 = vmul.f32 %v97, %v97
  %v472 = vmul.f32 %v99, %v99
  %v473 = vmul.f32 %v138, %v138
  %v474 = vmul.f32 %v140, %v140
  %v475 = vmul.f32 %v202, %v202
  %v476 = vmul.f32 %v204, %v204
  %v477 = vmul.f32 %v243, %v243
  %v478 = vmul.f32 %v245, %v245
  %v479 = vmul.f32 %v307, %v307
  %v480 = vmul.f32 %v309, %v309
  %v481 = vmul.f32 %v348, %v348
  %v482 = vmul.f32 %v350, %v350
  %v483 = vmul.f32 %v412, %v412
  %v484 = vmul.f32 %v414, %v414
  %v485 = vmul.f32 %v453, %v453
  %v486 = vmul.f32 %v455, %v455
  %v487 = vadd.f32 %v471, %v475
  %v488 = vadd.f32 %v487, %v479
  %v489 = vadd.f32 %v488, %v483
  %v490 = vadd.f32 %v472, %v476
  %v491 = vadd.f32 %v490, %v480
  %v492 = vadd.f32 %v491, %v484
  %v493 = vadd.f32 %v473, %v477
  %v494 = vadd.f32 %v493, %v481
  %v495 = vadd.f32 %v494, %v485
  %v496 = vadd.f32 %v474, %v478
  %v497 = vadd.f32 %v496, %v482
  %v498 = vadd.f32 %v497, %v486
  %v499 = vadd.f32 %v461, %v464
  %v500 = vadd.f32 %v499, %v467
  %v501 = vadd.f32 %v500, %v470
  %502 = vadd.xlane.f32.xlu0 %v501
  %v503 = vpop.xlane.xlu0 %502
  %v504 = vmul.f32 %v503, 0.00048828125
  %v505 = vadd.f32 %v489, %v492
  %v506 = vadd.f32 %v505, %v495
  %v507 = vadd.f32 %v506, %v498
  %508 = vadd.xlane.f32.xlu0 %v507
  %v509 = vpop.xlane.xlu0 %508
  %v510 = vmul.f32 %v509, 0.00048828125
  %v511 = vmul.f32 %v504, %v504
  %v512 = vsub.f32 %v510, %v511
  %v513 = vmax.f32 %v512, 0.0
  %v514 = vadd.f32 %v513, 1e-05
  %v515 = vrsqrt.pop %v514
  %v516 = vld [vmem:[%s2] sm:$0xff]
  %v517 = vmul.f32 %v515, %v516
  %v518 = vld [vmem:[%s3] sm:$0xff]
  %v519 = vmul.f32 %v504, %v517
  %v520 = vsub.f32 %v518, %v519
  %522 = vset.pattern.permute.xlu0 0
  %523 = vperm.xlu0 %522, %v517
  %v524 = vpop.permute.xlu0 %523
  %v526 = vmul.f32 %v97, %v524
  %v527 = vmul.f32 %v99, %v524
  %v528 = vmul.f32 %v138, %v524
  %v529 = vmul.f32 %v140, %v524
  %v530 = vmul.f32 %v202, %v524
  %v531 = vmul.f32 %v204, %v524
  %v532 = vmul.f32 %v243, %v524
  %v533 = vmul.f32 %v245, %v524
  %v534 = vmul.f32 %v307, %v524
  %v535 = vmul.f32 %v309, %v524
  %v536 = vmul.f32 %v348, %v524
  %v537 = vmul.f32 %v350, %v524
  %v538 = vmul.f32 %v412, %v524
  %v539 = vmul.f32 %v414, %v524
  %v540 = vmul.f32 %v453, %v524
  %v541 = vmul.f32 %v455, %v524
  %543 = vset.pattern.permute.xlu0 0
  %544 = vperm.xlu0 %543, %v520
  %v545 = vpop.permute.xlu0 %544
  %v547 = vadd.f32 %v526, %v545
  %v548 = vadd.f32 %v527, %v545
  %v549 = vadd.f32 %v528, %v545
  %v550 = vadd.f32 %v529, %v545
  %v551 = vadd.f32 %v530, %v545
  %v552 = vadd.f32 %v531, %v545
  %v553 = vadd.f32 %v532, %v545
  %v554 = vadd.f32 %v533, %v545
  %v555 = vadd.f32 %v534, %v545
  %v556 = vadd.f32 %v535, %v545
  %v557 = vadd.f32 %v536, %v545
  %v558 = vadd.f32 %v537, %v545
  %v559 = vadd.f32 %v538, %v545
  %v560 = vadd.f32 %v539, %v545
  %v561 = vadd.f32 %v540, %v545
  %v562 = vadd.f32 %v541, %v545
  %v563 = vmax.f32 %v547, 0.0
  %v564 = vmax.f32 %v548, 0.0
  %v565 = vmax.f32 %v549, 0.0
  %v566 = vmax.f32 %v550, 0.0
  %v567 = vmax.f32 %v551, 0.0
  %v568 = vmax.f32 %v552, 0.0
  %v569 = vmax.f32 %v553, 0.0
  %v570 = vmax.f32 %v554, 0.0
  %v571 = vmax.f32 %v555, 0.0
  %v572 = vmax.f32 %v556, 0.0
  %v573 = vmax.f32 %v557, 0.0
  %v574 = vmax.f32 %v558, 0.0
  %v575 = vmax.f32 %v559, 0.0
  %v576 = vmax.f32 %v560, 0.0
  %v577 = vmax.f32 %v561, 0.0
  %v578 = vmax.f32 %v562, 0.0
  %579 = vst [vmem:[%s4] sm:$0xff] %v563
  %580 = vst [vmem:[%s4 + $0x8] sm:$0xff] %v564
  %581 = vst [vmem:[%s4 + $0x10] sm:$0xff] %v565
  %582 = vst [vmem:[%s4 + $0x18] sm:$0xff] %v566
  %583 = vst [vmem:[%s4 + $0x20] sm:$0xff] %v567
  %584 = vst [vmem:[%s4 + $0x28] sm:$0xff] %v568
  %585 = vst [vmem:[%s4 + $0x30] sm:$0xff] %v569
  %586 = vst [vmem:[%s4 + $0x38] sm:$0xff] %v570
  %587 = vst [vmem:[%s4 + $0x40] sm:$0xff] %v571
  %588 = vst [vmem:[%s4 + $0x48] sm:$0xff] %v572
  %589 = vst [vmem:[%s4 + $0x50] sm:$0xff] %v573
  %590 = vst [vmem:[%s4 + $0x58] sm:$0xff] %v574
  %591 = vst [vmem:[%s4 + $0x60] sm:$0xff] %v575
  %592 = vst [vmem:[%s4 + $0x68] sm:$0xff] %v576
  %593 = vst [vmem:[%s4 + $0x70] sm:$0xff] %v577
  %594 = vst [vmem:[%s4 + $0x78] sm:$0xff] %v578
  // Predicated region
  $region18: #{gen_block_forward.1} parent=0 // pred_check
    _
  $region19: #{gen_block_forward.1} parent=0 // pred_check_branch
    %596 = sbr.rel (0) target = $region21
  $region20: #{gen_block_forward.1} parent=0 // pred_region
    _
  $region21: #{gen_block_forward.1} parent=0 // pred_fallthru
    _
  // Predicated region
  $region22: #{gen_block_forward.1} parent=0 // pred_check
    _
  $region23: #{gen_block_forward.1} parent=0 // pred_check_branch
    %598 = sbr.rel (0) target = $region25
  $region24: #{gen_block_forward.1} parent=0 // pred_region
    _
  $region25: #{gen_block_forward.1} parent=0 // pred_fallthru
    _

</llo_original>
